<compile_context>
chip_gen: v7x
topology: tpu7x:2x2x1
jax: 0.10.0
libtpu: 0.0.40
codegen_flags: <defaults>
</compile_context>

<pallas_src>
import jax
import jax.numpy as jnp
from jax import lax
from jax.experimental import pallas as pl
from jax.experimental.pallas import tpu as pltpu

_LANES = 128
_SUBLANES = 8
_MAX_SLAB_ROWS = 256   # strip-mine granularity (rows) inside one tile


def _cdiv(a, b):
    return -(-a // b)


def _chip_config():
    """Returns (num_splits, block_bytes_per_input, vmem_limit_bytes or None)."""
    kind = ""
    try:
        kind = jax.devices()[0].device_kind.lower()
    except Exception:
        pass
    if "v7" in kind or "7x" in kind:
        # 2 TensorCores, ~3.2 TB/s HBM -> big tiles; 64 MiB VMEM per TC so the
        # scoped limit must be raised to hold 2 inputs x 2 buffers x 8 MiB.
        return 2, 8 << 20, 48 << 20
    if "v6" in kind:
        # Single TC; 4 MiB tiles (16 MiB double-buffered) fit the 32 MiB
        # scoped-VMEM default with room to spare.
        return 1, 4 << 20, None
    # v5e / unknown: 2 MiB tiles fit the 16 MiB scoped default; per-step
    # overhead is already small at ~0.82 TB/s HBM.
    return 1, 2 << 20, None


def custom_loss(pred, target, weight=1.0):
    """weight * mean((pred - target)**2); hot reduction runs in a Pallas kernel."""
    assert pred.shape == target.shape, (pred.shape, target.shape)
    n_elems = pred.size
    assert n_elems > 0
    itemsize = jnp.dtype(pred.dtype).itemsize

    num_splits, block_bytes, vmem_limit = _chip_config()

    # Flatten (free) and view as (rows, 128).  All `rows` rows are valid data.
    flat_p = pred.reshape(-1)
    flat_t = target.reshape(-1)
    rem = n_elems % _LANES
    if rem:
        # TODO(synk): a <128-element remainder still costs one pad copy of each
        # input; could instead be handled by a tiny JAX-side tail reduction.
        flat_p = jnp.pad(flat_p, (0, _LANES - rem))
        flat_t = jnp.pad(flat_t, (0, _LANES - rem))
    rows = flat_p.size // _LANES
    p2 = flat_p.reshape(rows, _LANES)
    t2 = flat_t.reshape(rows, _LANES)

    # Tile sizing: largest block <= block_bytes per input, rows aligned for
    # f32 (8) / bf16 (16) sublane packing, and a multiple of the slab size so
    # the in-kernel strip-mine loop covers the tile exactly.
    row_align = _SUBLANES * max(1, 4 // itemsize)
    max_tile_rows = max(
        row_align,
        (block_bytes // (_LANES * itemsize)) // row_align * row_align)
    rows_per_split = _cdiv(rows, num_splits)
    tile_rows = min(max_tile_rows, _cdiv(rows_per_split, row_align) * row_align)
    slab_rows = min(_MAX_SLAB_ROWS, tile_rows)
    tile_rows = _cdiv(tile_rows, slab_rows) * slab_rows
    steps = _cdiv(rows_per_split, tile_rows)
    n_slabs = tile_rows // slab_rows
    # Last block index whose origin is still inside the array (index_map clamp
    # target for grid over-coverage; clamped blocks are fully masked in-kernel).
    last_block = (rows - 1) // tile_rows

    # weight / n_elems as a (1,1) SMEM scalar, folded into the kernel epilogue.
    scale = (jnp.asarray(weight, jnp.float32) / jnp.float32(n_elems)).reshape(1, 1)

    def kernel(scale_ref, pred_ref, tgt_ref, out_ref, acc_ref):
        split = pl.program_id(0)
        step = pl.program_id(1)

        @pl.when(step == 0)
        def _():
            acc_ref[...] = jnp.zeros_like(acc_ref)

        # Logical (unclamped) first row of this grid step in the (rows, 128)
        # view.  Rows at/after `rows` are garbage (partial or clamped block)
        # and are masked to zero before accumulation.
        tile_row0 = (split * steps + step) * tile_rows
        row_iota = lax.broadcasted_iota(jnp.int32, (slab_rows, _LANES), 0)

        def body(s, carry):
            off = pl.multiple_of(s * slab_rows, slab_rows)
            p = pred_ref[pl.ds(off, slab_rows), :].astype(jnp.float32)
            t = tgt_ref[pl.ds(off, slab_rows), :].astype(jnp.float32)
            d = p - t
            rows_left = rows - tile_row0 - off      # valid rows from slab start
            sq = jnp.where(row_iota < rows_left, d * d, 0.0)
            # Fold 8-row groups with pure vreg adds (no cross-lane XLU reduce).
            acc_ref[...] += jnp.sum(
                sq.reshape(slab_rows // _SUBLANES, _SUBLANES, _LANES), axis=0)
            return carry

        lax.fori_loop(0, n_slabs, body, 0, unroll=n_slabs <= 8)

        @pl.when(step == steps - 1)
        def _():
            # Apply weight / n_elems; write a lane-dense (8,128) block.
            out_ref[...] = acc_ref[...] * scale_ref[0, 0]

    in_map = lambda c, i: (jnp.minimum(c * steps + i, last_block), 0)

    grid_spec = pltpu.PrefetchScalarGridSpec(
        num_scalar_prefetch=0,
        grid=(num_splits, steps),
        in_specs=[
            pl.BlockSpec(memory_space=pltpu.MemorySpace.SMEM),   # scale scalar
            pl.BlockSpec((tile_rows, _LANES), in_map),           # pred tiles
            pl.BlockSpec((tile_rows, _LANES), in_map),           # target tiles
        ],
        out_specs=pl.BlockSpec((_SUBLANES, _LANES), lambda c, i: (c, 0)),
        scratch_shapes=[pltpu.VMEM((_SUBLANES, _LANES), jnp.float32)],
    )

    cp_kwargs = dict(dimension_semantics=("parallel", "arbitrary"))
    if vmem_limit is not None:
        cp_kwargs["vmem_limit_bytes"] = vmem_limit

    partials = pl.pallas_call(
        kernel,
        out_shape=jax.ShapeDtypeStruct((num_splits * _SUBLANES, _LANES), jnp.float32),
        grid_spec=grid_spec,
        compiler_params=pltpu.CompilerParams(**cp_kwargs),
        cost_estimate=pl.CostEstimate(
            flops=3 * n_elems,
            bytes_accessed=2 * n_elems * itemsize + num_splits * _SUBLANES * _LANES * 4,
            transcendentals=0),
    )(scale, p2, t2)

    # Combine per-split lane-parallel partials (tiny: num_splits*8*128 f32).
    return jnp.sum(partials)


if __name__ == "__main__":
    key = jax.random.PRNGKey(0)
    k1, k2 = jax.random.split(key)

    # Small demo shapes: batch=2, channels=4, spatial=16x16 (2048 elements).
    shape = (2, 4, 16, 16)
    pred = jax.random.normal(k1, shape, dtype=jnp.float32)
    target = jax.random.normal(k2, shape, dtype=jnp.float32)
    weight = 0.5

    loss_fn = jax.jit(custom_loss)
    loss = jax.block_until_ready(loss_fn(pred, target, weight))

    # Pure-JAX reference check.
    ref = weight * jnp.mean((pred - target) ** 2)
    assert jnp.allclose(loss, ref, rtol=1e-5, atol=1e-6), (loss, ref)

    print("KERNEL_OK")
</pallas_src>

<mosaic_0001>
module attributes {stable_mosaic.version = 11 : i64} {
  func.func @kernel(%arg0: i32, %arg1: i32, %arg2: memref<1x1xf32, #tpu.memory_space<smem>>, %arg3: memref<16x128xf32, #tpu.memory_space<vmem>>, %arg4: memref<16x128xf32, #tpu.memory_space<vmem>>, %arg5: memref<8x128xf32, #tpu.memory_space<vmem>>, %arg6: memref<8x128xf32, #tpu.memory_space<vmem>>) attributes {dimension_semantics = [#tpu.dimension_semantics<parallel>, #tpu.dimension_semantics<arbitrary>], iteration_bounds = array<i64: 1, 1>, scalar_prefetch = 0 : i64, scratch_operands = 1 : i64, tpu.core_type = #tpu.core_type<tc>, window_params = [{transform_indices = @transform_0, window_bounds = array<i64: 1, 1>}, {transform_indices = @transform_1, window_bounds = array<i64: 16, 128>}, {transform_indices = @transform_2, window_bounds = array<i64: 16, 128>}, {transform_indices = @transform_3, window_bounds = array<i64: 8, 128>}]} {
    %c0_i32 = arith.constant 0 : i32
    %0 = arith.cmpi eq, %arg1, %c0_i32 : i32
    %1 = arith.extui %0 : i1 to i32
    %c0_i32_0 = arith.constant 0 : i32
    %2 = arith.cmpi ne, %1, %c0_i32_0 : i32
    scf.if %2 {
      %cst_13 = arith.constant 0.000000e+00 : f32
      %29 = vector.broadcast %cst_13 : f32 to vector<8x128xf32>
      %c0_14 = arith.constant 0 : index
      %c0_15 = arith.constant 0 : index
      %30 = vector.load %arg6[%c0_14, %c0_15] : memref<8x128xf32, #tpu.memory_space<vmem>>, vector<8x128xf32>
      tpu.vector_store %arg6[%c0_14, %c0_15], %29 {strides = array<i32>} : memref<8x128xf32, #tpu.memory_space<vmem>>, vector<8x128xf32>,
    } else {
    }
    %c1_i32 = arith.constant 1 : i32
    %3 = arith.muli %arg0, %c1_i32 : i32
    %4 = arith.addi %3, %arg1 : i32
    %c16_i32 = arith.constant 16 : i32
    %5 = arith.muli %4, %c16_i32 : i32
    %6 = tpu.iota {dimensions = array<i32: 0>} : vector<16x128xi32>
    %c0_i32_1 = arith.constant 0 : i32
    %c16_i32_2 = arith.constant 16 : i32
    %7 = arith.muli %c0_i32_1, %c16_i32_2 : i32
    %8 = tpu.assume_multiple %7, 16 : i32
    %9 = arith.index_cast %8 : i32 to index
    %c0 = arith.constant 0 : index
    %10 = vector.load %arg3[%9, %c0] : memref<16x128xf32, #tpu.memory_space<vmem>>, vector<16x128xf32>
    %11 = arith.index_cast %8 : i32 to index
    %c0_3 = arith.constant 0 : index
    %12 = vector.load %arg4[%11, %c0_3] : memref<16x128xf32, #tpu.memory_space<vmem>>, vector<16x128xf32>
    %13 = arith.subf %10, %12 : vector<16x128xf32>
    %c16_i32_4 = arith.constant 16 : i32
    %14 = arith.subi %c16_i32_4, %5 : i32
    %15 = arith.subi %14, %8 : i32
    %16 = vector.broadcast %15 : i32 to vector<16x128xi32>
    %17 = arith.cmpi slt, %6, %16 : vector<16x128xi32>
    %18 = arith.mulf %13, %13 : vector<16x128xf32>
    %cst = arith.constant 0.000000e+00 : f32
    %19 = vector.broadcast %cst : f32 to vector<16x128xf32>
    %20 = arith.select %17, %18, %19 : vector<16x128xi1>, vector<16x128xf32>
    %c0_5 = arith.constant 0 : index
    %c0_6 = arith.constant 0 : index
    %21 = vector.load %arg6[%c0_5, %c0_6] : memref<8x128xf32, #tpu.memory_space<vmem>>, vector<8x128xf32>
    %22 = vector.shape_cast %20 : vector<16x128xf32> to vector<2x8x128xf32>
    %cst_7 = arith.constant dense<0.000000e+00> : vector<8x128xf32>
    %23 = vector.multi_reduction <add>, %22, %cst_7 [0] : vector<2x8x128xf32> to vector<8x128xf32>
    %24 = arith.addf %21, %23 : vector<8x128xf32>
    %c0_8 = arith.constant 0 : index
    %c0_9 = arith.constant 0 : index
    %25 = vector.load %arg6[%c0_8, %c0_9] : memref<8x128xf32, #tpu.memory_space<vmem>>, vector<8x128xf32>
    tpu.vector_store %arg6[%c0_8, %c0_9], %24 {strides = array<i32>} : memref<8x128xf32, #tpu.memory_space<vmem>>, vector<8x128xf32>,
    %c1_i32_10 = arith.constant 1 : i32
    %c0_i32_11 = arith.constant 0 : i32
    %26 = arith.cmpi eq, %arg1, %c0_i32_11 : i32
    %27 = arith.extui %26 : i1 to i32
    %c0_i32_12 = arith.constant 0 : i32
    %28 = arith.cmpi ne, %27, %c0_i32_12 : i32
    scf.if %28 {
      %c0_13 = arith.constant 0 : index
      %c0_14 = arith.constant 0 : index
      %29 = vector.load %arg6[%c0_13, %c0_14] : memref<8x128xf32, #tpu.memory_space<vmem>>, vector<8x128xf32>
      %c0_15 = arith.constant 0 : index
      %c0_16 = arith.constant 0 : index
      %30 = memref.load %arg2[%c0_15, %c0_16] : memref<1x1xf32, #tpu.memory_space<smem>>
      %31 = vector.broadcast %30 : f32 to vector<8x128xf32>
      %32 = arith.mulf %29, %31 : vector<8x128xf32>
      %c0_17 = arith.constant 0 : index
      %c0_18 = arith.constant 0 : index
      %33 = vector.load %arg5[%c0_17, %c0_18] : memref<8x128xf32, #tpu.memory_space<vmem>>, vector<8x128xf32>
      tpu.vector_store %arg5[%c0_17, %c0_18], %32 {strides = array<i32>} : memref<8x128xf32, #tpu.memory_space<vmem>>, vector<8x128xf32>,
    } else {
    }
    return
  }
  func.func @transform_0(%arg0: i32, %arg1: i32) -> (i32, i32) {
    %c0_i32 = arith.constant 0 : i32
    %c0_i32_0 = arith.constant 0 : i32
    %c0_i32_1 = arith.constant 0 : i32
    return %c0_i32, %c0_i32_0 : i32, i32
  }
  func.func @transform_1(%arg0: i32, %arg1: i32) -> (i32, i32) {
    %c1_i32 = arith.constant 1 : i32
    %0 = arith.muli %arg0, %c1_i32 : i32
    %1 = arith.addi %0, %arg1 : i32
    %c0_i32 = arith.constant 0 : i32
    %2 = arith.minsi %1, %c0_i32 : i32
    %c0_i32_0 = arith.constant 0 : i32
    %c0_i32_1 = arith.constant 0 : i32
    return %2, %c0_i32_0 : i32, i32
  }
  func.func @transform_2(%arg0: i32, %arg1: i32) -> (i32, i32) {
    %c1_i32 = arith.constant 1 : i32
    %0 = arith.muli %arg0, %c1_i32 : i32
    %1 = arith.addi %0, %arg1 : i32
    %c0_i32 = arith.constant 0 : i32
    %2 = arith.minsi %1, %c0_i32 : i32
    %c0_i32_0 = arith.constant 0 : i32
    %c0_i32_1 = arith.constant 0 : i32
    return %2, %c0_i32_0 : i32, i32
  }
  func.func @transform_3(%arg0: i32, %arg1: i32) -> (i32, i32) {
    %c0_i32 = arith.constant 0 : i32
    %c0_i32_0 = arith.constant 0 : i32
    return %arg0, %c0_i32 : i32, i32
  }
}

</mosaic_0001>

<llo_original>
// kernel: custom_loss.1
$region0: #{custom_loss.1}
  #allocation0 [shape = 'u32[]', space=smem, size = 0x4, offset = 0x4, fixed_abs, tag = 'smem constant byte address 0x4 - core index']
  #allocation1 [shape = 'u32[144,128]{1,0:T(1,128)}', space=vmem, size = 0x12000, scoped, tag = 'internal scratch']
  #allocation2 [shape = 'f32[8,128]{1,0:T(8,128)}', space=vmem, size = 0x1000, scoped, tag = 'scratch operand']
  #allocation3 [shape = 'f32[1,1]{1,0:T(1,128)S(6)}', space=smem, size = 0x200, scoped, tag = 'scoped memory for custom_loss.1']
  %s0 = inlined_call_operand.<no memory space> [shape: f32[1,1], index: 0, kind: input, shape index: {}]
  %s1 = inlined_call_operand.vmem [shape: f32[16,128], index: 1, kind: input, shape index: {}]
  %s2 = inlined_call_operand.vmem [shape: f32[16,128], index: 2, kind: input, shape index: {}]
  %s3 = inlined_call_operand.vmem [shape: f32[8,128], index: 3, kind: output, shape index: {}]
  %s4 = sld [smem:[#allocation0]]
  $region30: #{custom_loss.1} parent=0
    _
  %s6 = ssub.s32 1, %s4
  %s7 = scalar_select 0, %s6, %s4
  %8 = sst [smem:[#allocation3]] %s0
  // Predicated region
  $region2: #{custom_loss.1} parent=0 // pred_check
    _
  $region3: #{custom_loss.1} parent=0 // pred_check_branch
    %10 = sbr.rel (0) target = $region5
  $region4: #{custom_loss.1} parent=0 // pred_region
    _
  $region5: #{custom_loss.1} parent=0 // pred_fallthru
    _
  // Predicated region
  $region6: #{custom_loss.1} parent=0 // pred_check
    _
  $region7: #{custom_loss.1} parent=0 // pred_check_branch
    %12 = sbr.rel (0) target = $region9
  $region8: #{custom_loss.1} parent=0 // pred_region
    %s13 = sadd.s32 0, 0
    %p14 = scmp.lt.s32.totalorder %s13, 0
    %s15 = scalar_select %p14, %s13, 0
    %s16 = smul.u32 2, %s15
    %p17 = scmp.lt.s32.totalorder %s16, 1
    %s18 = scalar_select %p17, %s16, 1
    %s19 = smul.addr %s18, 8
    %s20 = scalar_lea.vmem %s1, %s19
    %s21 = sadd.s32 0, 0
    %p22 = scmp.lt.s32.totalorder %s21, 0
    %s23 = scalar_select %p22, %s21, 0
    %s24 = smul.u32 2, %s23
  $region9: #{custom_loss.1} parent=0 // pred_fallthru
    _
  // Predicated region
  $region10: #{custom_loss.1} parent=0 // pred_check
    _
  $region11: #{custom_loss.1} parent=0 // pred_check_branch
    %26 = sbr.rel (0) target = $region13
  $region12: #{custom_loss.1} parent=0 // pred_region
    %s27 = sadd.s32 0, 0
    %p28 = scmp.lt.s32.totalorder %s27, 0
    %s29 = scalar_select %p28, %s27, 0
    %s30 = smul.u32 2, %s29
    %p31 = scmp.lt.s32.totalorder %s30, 1
    %s32 = scalar_select %p31, %s30, 1
    %s33 = smul.addr %s32, 8
    %s34 = scalar_lea.vmem %s2, %s33
    %s35 = sadd.s32 0, 0
    %p36 = scmp.lt.s32.totalorder %s35, 0
    %s37 = scalar_select %p36, %s35, 0
    %s38 = smul.u32 2, %s37
  $region13: #{custom_loss.1} parent=0 // pred_fallthru
    _
  %s39 = sadd.s32 0, 0
  %p40 = scmp.lt.s32.totalorder %s39, 0
  %s41 = scalar_select %p40, %s39, 0
  %s42 = smul.u32 2, %s41
  %p43 = scmp.lt.s32.totalorder %s42, 1
  %s44 = scalar_select %p43, %s42, 1
  %s45 = smul.addr %s44, 8
  %s46 = scalar_lea.vmem %s1, %s45
  %s47 = sadd.s32 0, 0
  %p48 = scmp.lt.s32.totalorder %s47, 0
  %s49 = scalar_select %p48, %s47, 0
  %s50 = smul.u32 2, %s49
  %p51 = scmp.lt.s32.totalorder %s50, 1
  %s52 = scalar_select %p51, %s50, 1
  %s53 = smul.addr %s52, 8
  %s54 = scalar_lea.vmem %s2, %s53
  %s55 = sadd.s32 0, 0
  %p56 = scmp.lt.s32.totalorder %s55, 0
  %s57 = scalar_select %p56, %s55, 0
  %s58 = smul.u32 2, %s57
  %p59 = scmp.lt.s32.totalorder %s58, 1
  %s60 = scalar_select %p59, %s58, 1
  %s61 = smul.addr %s60, 8
  %s62 = scalar_lea.vmem %s1, %s61
  %s63 = sadd.s32 0, 0
  %p64 = scmp.lt.s32.totalorder %s63, 0
  %s65 = scalar_select %p64, %s63, 0
  %s66 = smul.u32 2, %s65
  %s67 = sadd.s32 0, 0
  %p68 = scmp.lt.s32.totalorder %s67, 0
  %s69 = scalar_select %p68, %s67, 0
  %s70 = smul.u32 2, %s69
  %p71 = scmp.lt.s32.totalorder %s70, 1
  %s72 = scalar_select %p71, %s70, 1
  %s73 = smul.addr %s72, 8
  %s74 = scalar_lea.vmem %s2, %s73
  %s75 = sadd.s32 0, 0
  %p76 = scmp.lt.s32.totalorder %s75, 0
  %s77 = scalar_select %p76, %s75, 0
  %s78 = smul.u32 2, %s77
  %p79 = scmp.eq.s32.totalorder 0, 0
  // Predicated region
  $region14: #{custom_loss.1} parent=0 // pred_check
    %p80 = pneg %p79
  $region15: #{custom_loss.1} parent=0 // pred_check_branch
    %82 = sbr.rel (%p80) target = $region17
  $region16: #{custom_loss.1} parent=0 // pred_region
    %83 = vst [vmem:[#allocation2] sm:$0xff] 0.0
  $region17: #{custom_loss.1} parent=0 // pred_fallthru
    _
  %s84 = sadd.s32 0, 0
  %s85 = smul.u32 %s84, 16
  %v86 = vlaneseq
  %v87 = vshrl.u32 %v86, 7
  %v88 = vadd.s32 %v87, 8
  %v89 = vld [vmem:[%s62] sm:$0xff]
  %v90 = vld [vmem:[%s62 + $0x8] sm:$0xff]
  %v91 = vld [vmem:[%s74] sm:$0xff]
  %v92 = vld [vmem:[%s74 + $0x8] sm:$0xff]
  %v93 = vsub.f32 %v89, %v91
  %v94 = vsub.f32 %v90, %v92
  %s95 = ssub.s32 16, %s85
  %s96 = ssub.s32 %s95, 0
  %v97 = vstv %s96
  %vm98 = vcmp.lt.s32.totalorder %v87, %v97
  %vm99 = vcmp.lt.s32.totalorder %v88, %v97
  %v100 = vmul.f32 %v93, %v93
  %v101 = vmul.f32 %v94, %v94
  %v102 = vsel %vm98, %v100, 0.0
  %v103 = vsel %vm99, %v101, 0.0
  %v104 = vld [vmem:[#allocation2] sm:$0xff]
  %v105 = vadd.f32 %v102, %v103
  %v106 = vadd.f32 %v104, %v105
  %107 = vst [vmem:[#allocation2] sm:$0xff] %v106
  // Predicated region
  $region18: #{custom_loss.1} parent=0 // pred_check
    %p108 = pneg %p79
  $region19: #{custom_loss.1} parent=0 // pred_check_branch
    %110 = sbr.rel (%p108) target = $region21
  $region20: #{custom_loss.1} parent=0 // pred_region
    %v111 = vld [vmem:[#allocation2] sm:$0xff]
    %s112 = sld [smem:[#allocation3]]
    %v113 = vstv %s112
    %v114 = vmul.f32 %v111, %v113
    %115 = vst [vmem:[%s3] sm:$0xff] %v114
  $region21: #{custom_loss.1} parent=0 // pred_fallthru
    _
  // Predicated region
  $region22: #{custom_loss.1} parent=0 // pred_check
    _
  $region23: #{custom_loss.1} parent=0 // pred_check_branch
    %117 = sbr.rel (0) target = $region25
  $region24: #{custom_loss.1} parent=0 // pred_region
    _
  $region25: #{custom_loss.1} parent=0 // pred_fallthru
    _
  // Predicated region
  $region26: #{custom_loss.1} parent=0 // pred_check
    _
  $region27: #{custom_loss.1} parent=0 // pred_check_branch
    %119 = sbr.rel (0) target = $region29
  $region28: #{custom_loss.1} parent=0 // pred_region
    _
  $region29: #{custom_loss.1} parent=0 // pred_fallthru
    _

</llo_original>
